<compile_context>
chip_gen: v5e
topology: v5e:2x2
jax: 0.10.0
libtpu: 0.0.40
codegen_flags: <defaults>
</compile_context>

<pallas_src>
import functools

import jax
import jax.numpy as jnp
from jax.experimental import pallas as pl
from jax.experimental.pallas import tpu as pltpu

BN_EPS = 1e-5


def _vmem_budget_bytes():
    """Generation-aware VMEM budget: ~3/4 of physical (96 MiB on v5e/v6e,
    48 MiB on v7x), conservative fallback if the query is unavailable."""
    try:
        phys = int(pltpu.get_tpu_info().vmem_capacity_bytes)
    except Exception:
        phys = 64 * 1024 * 1024          # assume v7x-sized VMEM (safe everywhere)
    return min(phys * 3 // 4, 100 * 1024 * 1024)


def _pick_batch_block(n, per_sample_bytes, avail_bytes):
    """Largest divisor of n whose double-buffered per-step block fits the budget,
    preferring >= 2 grid steps (megacore sharding on v7x, DMA/compute overlap)."""
    nb_max = max(1, int(avail_bytes // max(1, 2 * per_sample_bytes)))
    divs = [d for d in range(1, n + 1) if n % d == 0 and d <= nb_max] or [1]
    multi = [d for d in divs if n // d >= 2]
    return max(multi) if multi else max(divs)


def pack_conv_weights(conv_w, Wp, OW, stride):
    """(OC, C, KH, KW) PyTorch layout -> width-unrolled (KH, Wp*C, OW*OC) bf16.

    W_big[kh, iw*C + c, ow*OC + oc] = conv_w[oc, c, kh, iw - ow*stride]
    (zero when the tap falls outside [0, KW)).  Do this once per model at load
    time in production; it is cheap enough to keep inside the jitted wrapper here."""
    OC, C, KH, KW = conv_w.shape
    w_t = jnp.transpose(conv_w.astype(jnp.float32), (2, 3, 1, 0))       # (KH,KW,C,OC)
    iw = jnp.arange(Wp)[None, :, None]
    tap = jnp.arange(OW)[None, None, :] * stride + jnp.arange(KW)[:, None, None]
    m = (iw == tap).astype(jnp.float32)                                  # (KW,Wp,OW)
    w_big = jnp.einsum("bio,abcd->aicod", m, w_t)                        # (KH,Wp,C,OW,OC)
    return w_big.reshape(KH, Wp * C, OW * OC).astype(jnp.bfloat16)


def _make_kernel(H, OH, OW, OC, KH, stride, pad):
    OWOC = OW * OC

    def kernel(x_ref, scale_ref, shift_ref, w_ref, o_ref):
        # x_ref:     (Nb, Hp, Wp*C)    bf16, spatially zero-padded, W/C in lanes
        # scale_ref: (1, Wp*C)         f32  BN*gate scale, lane-tiled
        # shift_ref: (1, Wp*C)         f32  BN*gate shift, zeroed on padding cols
        # w_ref:     (KH, Wp*C, OW*OC) bf16 width-unrolled conv weights
        # o_ref:     (Nb, OH, OW*OC)   f32  output block; doubles as the accumulator
        nb = x_ref.shape[0]
        wpc = x_ref.shape[2]
        scale = scale_ref[...][None]                      # (1, 1, Wp*C)
        shift = shift_ref[...][None]                      # (1, 1, Wp*C)

        for kh in range(KH):                              # static unroll, KH small
            rows = pl.ds(kh, OH) if stride == 1 else pl.ds(kh, OH, stride)
            xb = x_ref[:, rows, :].astype(jnp.float32)    # (Nb, OH, Wp*C)

            # x is exactly zero on the spatial padding border, so only the additive
            # shift must be masked there ("zero-pad AFTER BN + gate"): padding
            # columns are pre-zeroed in shift_ref, padding rows are masked here.
            if pad > 0:
                r = kh + stride * jax.lax.broadcasted_iota(jnp.int32, (OH, 1), 0)
                rowmask = ((r >= pad) & (r < pad + H)).astype(jnp.float32)[None]
                y = xb * scale + rowmask * shift
            else:
                y = xb * scale + shift

            lhs = y.reshape(nb * OH, wpc).astype(jnp.bfloat16)
            contrib = jnp.dot(lhs, w_ref[kh],
                              preferred_element_type=jnp.float32)
            contrib = contrib.reshape(nb, OH, OWOC)
            if kh == 0:
                o_ref[...] = contrib                      # init (no zero-fill pass)
            else:
                o_ref[...] += contrib                     # VMEM-resident accumulation

    return kernel


@functools.partial(jax.jit, static_argnames=("stride", "padding"))
def selective_conv2d(x_nchw, conv_w, bn_gamma, bn_beta, is_open, *,
                     stride=1, padding=0):
    """x_nchw: (N,C,H,W); conv_w: (OC,C,KH,KW) PyTorch layout. Returns (N,OC,OH,OW)."""
    N, C, H, W = x_nchw.shape
    OC, _, KH, KW = conv_w.shape
    pad = padding
    OH = (H + 2 * pad - KH) // stride + 1
    OW = (W + 2 * pad - KW) // stride + 1
    Hp, Wp = H + 2 * pad, W + 2 * pad
    WpC, OWOC = Wp * C, OW * OC

    x32 = x_nchw.astype(jnp.float32)

    # ---- BN train-mode batch stats (biased var, two-pass for numerical safety),
    #      folded with gamma/beta and the is_open gate into per-channel scale/shift.
    mean = jnp.mean(x32, axis=(0, 2, 3))
    var = jnp.mean(jnp.square(x32 - mean.reshape(1, C, 1, 1)), axis=(0, 2, 3))
    inv = bn_gamma.astype(jnp.float32) * jax.lax.rsqrt(var + BN_EPS)
    gate = is_open.astype(jnp.float32)
    scale_c = inv * gate
    shift_c = (bn_beta.astype(jnp.float32) - mean * inv) * gate

    # Tile scale/shift into the flattened (Wp*C) lane layout; fold the left/right
    # padding-column mask into shift (x itself is already zero there).
    col_valid = ((jnp.arange(Wp) >= pad) & (jnp.arange(Wp) < pad + W)).astype(jnp.float32)
    scale_t = jnp.tile(scale_c[None, :], (Wp, 1)).reshape(1, WpC)
    shift_t = (col_valid[:, None] * shift_c[None, :]).reshape(1, WpC)

    # One producer chain (fused by XLA): NCHW->NHWC, bf16 cast, zero-pad border,
    # flatten W and C into the lane dimension.
    xpad = jnp.pad(jnp.transpose(x_nchw, (0, 2, 3, 1)).astype(jnp.bfloat16),
                   ((0, 0), (pad, pad), (pad, pad), (0, 0))).reshape(N, Hp, WpC)

    w_packed = pack_conv_weights(conv_w, Wp, OW, stride)          # (KH, WpC, OWOC)

    # ---- generation-aware tiling: whole padded image(s) per grid step ----
    budget = _vmem_budget_bytes()
    in_bytes = Hp * WpC * 2                   # bf16 input block per sample
    out_bytes = OH * OWOC * 4                 # f32 output block per sample
    w_bytes = KH * WpC * OWOC * 2
    avail = max(budget - 2 * w_bytes - (4 << 20), budget // 4)
    if 2 * (in_bytes + out_bytes) > avail:
        # TODO(synk): halo'd row-band manual-DMA path for large H*W.
        raise NotImplementedError("padded sample exceeds the per-step VMEM budget")
    Nb = _pick_batch_block(N, in_bytes + out_bytes, avail)

    kernel = _make_kernel(H, OH, OW, OC, KH, stride, pad)

    out = pl.pallas_call(
        kernel,
        out_shape=jax.ShapeDtypeStruct((N, OH, OWOC), jnp.float32),
        grid=(N // Nb,),
        in_specs=[
            pl.BlockSpec((Nb, Hp, WpC), lambda n: (n, 0, 0)),
            pl.BlockSpec((1, WpC), lambda n: (0, 0)),
            pl.BlockSpec((1, WpC), lambda n: (0, 0)),
            pl.BlockSpec((KH, WpC, OWOC), lambda n: (0, 0, 0)),
        ],
        out_specs=pl.BlockSpec((Nb, OH, OWOC), lambda n: (n, 0, 0)),
        compiler_params=pltpu.CompilerParams(
            dimension_semantics=("parallel",),    # batch axis -> megacore sharding
            vmem_limit_bytes=budget,
        ),
    )(xpad, scale_t, shift_t, w_packed)

    # Only the real OC columns ever reached HBM; this reshape is free (contiguous)
    # and the transpose touches just N*OC*OH*OW values (PyTorch NCHW interface).
    return jnp.transpose(out.reshape(N, OH, OW, OC), (0, 3, 1, 2))


def _reference(x_nchw, conv_w, bn_gamma, bn_beta, is_open, stride, padding):
    """Pure-JAX f32 reference matching the PyTorch forward (train-mode BN)."""
    mean = jnp.mean(x_nchw, axis=(0, 2, 3), keepdims=True)
    var = jnp.mean((x_nchw - mean) ** 2, axis=(0, 2, 3), keepdims=True)
    xn = (x_nchw - mean) * jax.lax.rsqrt(var + BN_EPS)
    y = xn * bn_gamma.reshape(1, -1, 1, 1) + bn_beta.reshape(1, -1, 1, 1)
    y = y * is_open.reshape(1, -1, 1, 1)
    return jax.lax.conv_general_dilated(
        y, conv_w, (stride, stride),
        [(padding, padding), (padding, padding)],
        dimension_numbers=("NCHW", "OIHW", "NCHW"),
    )


if __name__ == "__main__":
    # SelectiveConv2d(in_channels=4, out_channels=8, kernel_size=3, stride=1, padding=1)
    N, C, H, W = 2, 4, 16, 16
    OC, KH, KW = 8, 3, 3
    stride, padding = 1, 1

    key = jax.random.PRNGKey(0)
    k1, k2, k3, k4 = jax.random.split(key, 4)

    x = jax.random.normal(k1, (N, C, H, W), jnp.float32)
    conv_w = jax.random.normal(k2, (OC, C, KH, KW), jnp.float32) / jnp.sqrt(C * KH * KW)
    bn_gamma = 1.0 + 0.1 * jax.random.normal(k3, (C,), jnp.float32)
    bn_beta = 0.1 * jax.random.normal(k4, (C,), jnp.float32)
    is_open = jnp.ones((C,), jnp.float32)          # buffer `is_open` (all gates open)

    out = selective_conv2d(x, conv_w, bn_gamma, bn_beta, is_open,
                           stride=stride, padding=padding)
    out = jax.block_until_ready(out)

    ref = _reference(x, conv_w, bn_gamma, bn_beta, is_open, stride, padding)
    assert out.shape == ref.shape == (N, OC, H, W)
    max_err = float(jnp.max(jnp.abs(out - ref)))
    # bf16 activations/weights (f32 accumulation) -> allow bf16-level error vs f32 ref.
    assert max_err < 5e-2, f"mismatch vs reference: {max_err}"
    print("KERNEL_OK")
</pallas_src>

<mosaic_0001>
module attributes {stable_mosaic.version = 11 : i64} {
  func.func @kernel(%arg0: i32, %arg1: memref<1x18x72xbf16, #tpu.memory_space<vmem>>, %arg2: memref<1x72xf32, #tpu.memory_space<vmem>>, %arg3: memref<1x72xf32, #tpu.memory_space<vmem>>, %arg4: memref<3x72x128xbf16, #tpu.memory_space<vmem>>, %arg5: memref<1x16x128xf32, #tpu.memory_space<vmem>>) attributes {dimension_semantics = [#tpu.dimension_semantics<parallel>], iteration_bounds = array<i64: 2>, scalar_prefetch = 0 : i64, scratch_operands = 0 : i64, tpu.core_type = #tpu.core_type<tc>, window_params = [{transform_indices = @transform_0, window_bounds = array<i64: 1, 18, 72>}, {pipeline_mode = #tpu.pipeline_mode<synchronous>, transform_indices = @transform_1, window_bounds = array<i64: 1, 72>}, {pipeline_mode = #tpu.pipeline_mode<synchronous>, transform_indices = @transform_2, window_bounds = array<i64: 1, 72>}, {pipeline_mode = #tpu.pipeline_mode<synchronous>, transform_indices = @transform_3, window_bounds = array<i64: 3, 72, 128>}, {transform_indices = @transform_4, window_bounds = array<i64: 1, 16, 128>}]} {
    %c0 = arith.constant 0 : index
    %c0_0 = arith.constant 0 : index
    %0 = vector.load %arg2[%c0, %c0_0] : memref<1x72xf32, #tpu.memory_space<vmem>>, vector<1x72xf32>
    %1 = vector.shape_cast %0 : vector<1x72xf32> to vector<1x1x72xf32>
    %c0_1 = arith.constant 0 : index
    %c0_2 = arith.constant 0 : index
    %2 = vector.load %arg3[%c0_1, %c0_2] : memref<1x72xf32, #tpu.memory_space<vmem>>, vector<1x72xf32>
    %3 = vector.shape_cast %2 : vector<1x72xf32> to vector<1x1x72xf32>
    %c0_3 = arith.constant 0 : index
    %c0_4 = arith.constant 0 : index
    %c0_5 = arith.constant 0 : index
    %4 = vector.load %arg1[%c0_3, %c0_4, %c0_5] : memref<1x18x72xbf16, #tpu.memory_space<vmem>>, vector<1x16x72xbf16>
    %5 = arith.extf %4 : vector<1x16x72xbf16> to vector<1x16x72xf32>
    %6 = tpu.iota {dimensions = array<i32: 0>} : vector<16x1xi32>
    %c1_i32 = arith.constant 1 : i32
    %7 = vector.broadcast %c1_i32 : i32 to vector<16x1xi32>
    %8 = arith.muli %7, %6 : vector<16x1xi32>
    %c0_i32 = arith.constant 0 : i32
    %9 = vector.broadcast %c0_i32 : i32 to vector<16x1xi32>
    %10 = arith.addi %9, %8 : vector<16x1xi32>
    %c1_i32_6 = arith.constant 1 : i32
    %11 = vector.broadcast %c1_i32_6 : i32 to vector<16x1xi32>
    %12 = arith.cmpi sge, %10, %11 : vector<16x1xi32>
    %c17_i32 = arith.constant 17 : i32
    %13 = vector.broadcast %c17_i32 : i32 to vector<16x1xi32>
    %14 = arith.cmpi slt, %10, %13 : vector<16x1xi32>
    %15 = arith.andi %12, %14 : vector<16x1xi1>
    %16 = arith.extui %15 : vector<16x1xi1> to vector<16x1xi32>
    %17 = arith.sitofp %16 : vector<16x1xi32> to vector<16x1xf32>
    %18 = vector.shape_cast %17 : vector<16x1xf32> to vector<1x16x1xf32>
    %19 = vector.broadcast %1 : vector<1x1x72xf32> to vector<1x16x72xf32>
    %20 = arith.mulf %5, %19 : vector<1x16x72xf32>
    %21 = vector.broadcast %18 : vector<1x16x1xf32> to vector<1x16x72xf32>
    %22 = vector.broadcast %3 : vector<1x1x72xf32> to vector<1x16x72xf32>
    %23 = arith.mulf %21, %22 : vector<1x16x72xf32>
    %24 = arith.addf %20, %23 : vector<1x16x72xf32>
    %25 = vector.shape_cast %24 : vector<1x16x72xf32> to vector<16x72xf32>
    %26 = arith.truncf %25 : vector<16x72xf32> to vector<16x72xbf16>
    %c0_7 = arith.constant 0 : index
    %c0_8 = arith.constant 0 : index
    %c0_9 = arith.constant 0 : index
    %27 = vector.load %arg4[%c0_7, %c0_8, %c0_9] : memref<3x72x128xbf16, #tpu.memory_space<vmem>>, vector<1x72x128xbf16>
    %28 = vector.shape_cast %27 : vector<1x72x128xbf16> to vector<72x128xbf16>
    %cst = arith.constant dense<0.000000e+00> : vector<16x128xf32>
    %29 = tpu.matmul %26, %28, %cst {dimension_numbers = #tpu.dot_dimension_numbers<[1], [0], [0], [1], [0, 0, 1, 1], [], []>} : vector<16x72xbf16>, vector<72x128xbf16>, vector<16x128xf32> -> vector<16x128xf32>
    %30 = vector.shape_cast %29 : vector<16x128xf32> to vector<1x16x128xf32>
    %c0_10 = arith.constant 0 : index
    %c0_11 = arith.constant 0 : index
    %c0_12 = arith.constant 0 : index
    %31 = vector.load %arg5[%c0_10, %c0_11, %c0_12] : memref<1x16x128xf32, #tpu.memory_space<vmem>>, vector<1x16x128xf32>
    tpu.vector_store %arg5[%c0_10, %c0_11, %c0_12], %30 {strides = array<i32>} : memref<1x16x128xf32, #tpu.memory_space<vmem>>, vector<1x16x128xf32>,
    %c0_13 = arith.constant 0 : index
    %c1 = arith.constant 1 : index
    %c0_14 = arith.constant 0 : index
    %32 = vector.load %arg1[%c0_13, %c1, %c0_14] : memref<1x18x72xbf16, #tpu.memory_space<vmem>>, vector<1x16x72xbf16>
    %33 = arith.extf %32 : vector<1x16x72xbf16> to vector<1x16x72xf32>
    %34 = tpu.iota {dimensions = array<i32: 0>} : vector<16x1xi32>
    %c1_i32_15 = arith.constant 1 : i32
    %35 = vector.broadcast %c1_i32_15 : i32 to vector<16x1xi32>
    %36 = arith.muli %35, %34 : vector<16x1xi32>
    %c1_i32_16 = arith.constant 1 : i32
    %37 = vector.broadcast %c1_i32_16 : i32 to vector<16x1xi32>
    %38 = arith.addi %37, %36 : vector<16x1xi32>
    %c1_i32_17 = arith.constant 1 : i32
    %39 = vector.broadcast %c1_i32_17 : i32 to vector<16x1xi32>
    %40 = arith.cmpi sge, %38, %39 : vector<16x1xi32>
    %c17_i32_18 = arith.constant 17 : i32
    %41 = vector.broadcast %c17_i32_18 : i32 to vector<16x1xi32>
    %42 = arith.cmpi slt, %38, %41 : vector<16x1xi32>
    %43 = arith.andi %40, %42 : vector<16x1xi1>
    %44 = arith.extui %43 : vector<16x1xi1> to vector<16x1xi32>
    %45 = arith.sitofp %44 : vector<16x1xi32> to vector<16x1xf32>
    %46 = vector.shape_cast %45 : vector<16x1xf32> to vector<1x16x1xf32>
    %47 = vector.broadcast %1 : vector<1x1x72xf32> to vector<1x16x72xf32>
    %48 = arith.mulf %33, %47 : vector<1x16x72xf32>
    %49 = vector.broadcast %46 : vector<1x16x1xf32> to vector<1x16x72xf32>
    %50 = vector.broadcast %3 : vector<1x1x72xf32> to vector<1x16x72xf32>
    %51 = arith.mulf %49, %50 : vector<1x16x72xf32>
    %52 = arith.addf %48, %51 : vector<1x16x72xf32>
    %53 = vector.shape_cast %52 : vector<1x16x72xf32> to vector<16x72xf32>
    %54 = arith.truncf %53 : vector<16x72xf32> to vector<16x72xbf16>
    %c1_19 = arith.constant 1 : index
    %c0_20 = arith.constant 0 : index
    %c0_21 = arith.constant 0 : index
    %55 = vector.load %arg4[%c1_19, %c0_20, %c0_21] : memref<3x72x128xbf16, #tpu.memory_space<vmem>>, vector<1x72x128xbf16>
    %56 = vector.shape_cast %55 : vector<1x72x128xbf16> to vector<72x128xbf16>
    %cst_22 = arith.constant dense<0.000000e+00> : vector<16x128xf32>
    %57 = tpu.matmul %54, %56, %cst_22 {dimension_numbers = #tpu.dot_dimension_numbers<[1], [0], [0], [1], [0, 0, 1, 1], [], []>} : vector<16x72xbf16>, vector<72x128xbf16>, vector<16x128xf32> -> vector<16x128xf32>
    %58 = vector.shape_cast %57 : vector<16x128xf32> to vector<1x16x128xf32>
    %c0_23 = arith.constant 0 : index
    %c0_24 = arith.constant 0 : index
    %c0_25 = arith.constant 0 : index
    %59 = vector.load %arg5[%c0_23, %c0_24, %c0_25] : memref<1x16x128xf32, #tpu.memory_space<vmem>>, vector<1x16x128xf32>
    %60 = arith.addf %59, %58 : vector<1x16x128xf32>
    %c0_26 = arith.constant 0 : index
    %c0_27 = arith.constant 0 : index
    %c0_28 = arith.constant 0 : index
    %61 = vector.load %arg5[%c0_26, %c0_27, %c0_28] : memref<1x16x128xf32, #tpu.memory_space<vmem>>, vector<1x16x128xf32>
    tpu.vector_store %arg5[%c0_26, %c0_27, %c0_28], %60 {strides = array<i32>} : memref<1x16x128xf32, #tpu.memory_space<vmem>>, vector<1x16x128xf32>,
    %c0_29 = arith.constant 0 : index
    %c2 = arith.constant 2 : index
    %c0_30 = arith.constant 0 : index
    %62 = vector.load %arg1[%c0_29, %c2, %c0_30] : memref<1x18x72xbf16, #tpu.memory_space<vmem>>, vector<1x16x72xbf16>
    %63 = arith.extf %62 : vector<1x16x72xbf16> to vector<1x16x72xf32>
    %64 = tpu.iota {dimensions = array<i32: 0>} : vector<16x1xi32>
    %c1_i32_31 = arith.constant 1 : i32
    %65 = vector.broadcast %c1_i32_31 : i32 to vector<16x1xi32>
    %66 = arith.muli %65, %64 : vector<16x1xi32>
    %c2_i32 = arith.constant 2 : i32
    %67 = vector.broadcast %c2_i32 : i32 to vector<16x1xi32>
    %68 = arith.addi %67, %66 : vector<16x1xi32>
    %c1_i32_32 = arith.constant 1 : i32
    %69 = vector.broadcast %c1_i32_32 : i32 to vector<16x1xi32>
    %70 = arith.cmpi sge, %68, %69 : vector<16x1xi32>
    %c17_i32_33 = arith.constant 17 : i32
    %71 = vector.broadcast %c17_i32_33 : i32 to vector<16x1xi32>
    %72 = arith.cmpi slt, %68, %71 : vector<16x1xi32>
    %73 = arith.andi %70, %72 : vector<16x1xi1>
    %74 = arith.extui %73 : vector<16x1xi1> to vector<16x1xi32>
    %75 = arith.sitofp %74 : vector<16x1xi32> to vector<16x1xf32>
    %76 = vector.shape_cast %75 : vector<16x1xf32> to vector<1x16x1xf32>
    %77 = vector.broadcast %1 : vector<1x1x72xf32> to vector<1x16x72xf32>
    %78 = arith.mulf %63, %77 : vector<1x16x72xf32>
    %79 = vector.broadcast %76 : vector<1x16x1xf32> to vector<1x16x72xf32>
    %80 = vector.broadcast %3 : vector<1x1x72xf32> to vector<1x16x72xf32>
    %81 = arith.mulf %79, %80 : vector<1x16x72xf32>
    %82 = arith.addf %78, %81 : vector<1x16x72xf32>
    %83 = vector.shape_cast %82 : vector<1x16x72xf32> to vector<16x72xf32>
    %84 = arith.truncf %83 : vector<16x72xf32> to vector<16x72xbf16>
    %c2_34 = arith.constant 2 : index
    %c0_35 = arith.constant 0 : index
    %c0_36 = arith.constant 0 : index
    %85 = vector.load %arg4[%c2_34, %c0_35, %c0_36] : memref<3x72x128xbf16, #tpu.memory_space<vmem>>, vector<1x72x128xbf16>
    %86 = vector.shape_cast %85 : vector<1x72x128xbf16> to vector<72x128xbf16>
    %cst_37 = arith.constant dense<0.000000e+00> : vector<16x128xf32>
    %87 = tpu.matmul %84, %86, %cst_37 {dimension_numbers = #tpu.dot_dimension_numbers<[1], [0], [0], [1], [0, 0, 1, 1], [], []>} : vector<16x72xbf16>, vector<72x128xbf16>, vector<16x128xf32> -> vector<16x128xf32>
    %88 = vector.shape_cast %87 : vector<16x128xf32> to vector<1x16x128xf32>
    %c0_38 = arith.constant 0 : index
    %c0_39 = arith.constant 0 : index
    %c0_40 = arith.constant 0 : index
    %89 = vector.load %arg5[%c0_38, %c0_39, %c0_40] : memref<1x16x128xf32, #tpu.memory_space<vmem>>, vector<1x16x128xf32>
    %90 = arith.addf %89, %88 : vector<1x16x128xf32>
    %c0_41 = arith.constant 0 : index
    %c0_42 = arith.constant 0 : index
    %c0_43 = arith.constant 0 : index
    %91 = vector.load %arg5[%c0_41, %c0_42, %c0_43] : memref<1x16x128xf32, #tpu.memory_space<vmem>>, vector<1x16x128xf32>
    tpu.vector_store %arg5[%c0_41, %c0_42, %c0_43], %90 {strides = array<i32>} : memref<1x16x128xf32, #tpu.memory_space<vmem>>, vector<1x16x128xf32>,
    return
  }
  func.func @transform_0(%arg0: i32) -> (i32, i32, i32) {
    %c0_i32 = arith.constant 0 : i32
    %c0_i32_0 = arith.constant 0 : i32
    %c0_i32_1 = arith.constant 0 : i32
    return %arg0, %c0_i32, %c0_i32_0 : i32, i32, i32
  }
  func.func @transform_1(%arg0: i32) -> (i32, i32) {
    %c0_i32 = arith.constant 0 : i32
    %c0_i32_0 = arith.constant 0 : i32
    %c0_i32_1 = arith.constant 0 : i32
    return %c0_i32, %c0_i32_0 : i32, i32
  }
  func.func @transform_2(%arg0: i32) -> (i32, i32) {
    %c0_i32 = arith.constant 0 : i32
    %c0_i32_0 = arith.constant 0 : i32
    %c0_i32_1 = arith.constant 0 : i32
    return %c0_i32, %c0_i32_0 : i32, i32
  }
  func.func @transform_3(%arg0: i32) -> (i32, i32, i32) {
    %c0_i32 = arith.constant 0 : i32
    %c0_i32_0 = arith.constant 0 : i32
    %c0_i32_1 = arith.constant 0 : i32
    %c0_i32_2 = arith.constant 0 : i32
    return %c0_i32, %c0_i32_0, %c0_i32_1 : i32, i32, i32
  }
  func.func @transform_4(%arg0: i32) -> (i32, i32, i32) {
    %c0_i32 = arith.constant 0 : i32
    %c0_i32_0 = arith.constant 0 : i32
    %c0_i32_1 = arith.constant 0 : i32
    return %arg0, %c0_i32, %c0_i32_0 : i32, i32, i32
  }
}

</mosaic_0001>

<llo_original>
// kernel: tile.6
$region0: #{tile.6}
  #allocation0 [shape = 's32[1]{0}', space=sflag, size = 0x4, scoped, tag = 'scoped memory for tile.6']
  %s0 = inlined_call_operand.vmem [shape: f32[4], index: 0, kind: input, shape index: {}]
  %s1 = inlined_call_operand.vmem [shape: f32[18,1,1,4], index: 1, kind: output, shape index: {}]
  // Predicated region
  $region2: #{tile.6} parent=0 // pred_check
    _
  $region3: #{tile.6} parent=0 // pred_check_branch
    %3 = sbr.rel (0) target = $region5
  $region4: #{tile.6} parent=0 // pred_region
    _
  $region5: #{tile.6} parent=0 // pred_fallthru
    _
  %v4 = vld [vmem:[%s0] ss:$0 sm:$0xff]
  %5 = vst [vmem:[%s1] sm:$0xff] %v4
  %s6 = scalar_lea.vmem %s1, 8
  %7 = vst [vmem:[%s6] sm:$0xff] %v4
  %s8 = scalar_lea.vmem %s1, 16
  %9 = vst [vmem:[%s8] sm:$0xff] %v4

// kernel: tile.7
$region0: #{tile.7}
  %s0 = inlined_call_operand.vmem [shape: f32[18,1,1,4], index: 0, kind: input, shape index: {}]
  %s1 = inlined_call_operand.vmem [shape: f32[1,72], index: 1, kind: output, shape index: {}]
  $region1: #{tile.7} parent=0
    #allocation0 [shape = 'u8[4096]{0}', space=vmem, size = 0x1000, scoped, tag = 'scoped mem for output reshape']
    %v2 = vld [vmem:[%s0] sm:$0x1]
    %vm3 = vcmask 31744
    %4 = vst.msk [vmem:[#allocation0] sm:$0x1] %vm3, %v2
    %s5 = scalar_lea.vmem %s0, 17
    %v6 = vld [vmem:[%s5] sm:$0x1]
    %7 = vrot.lane.b32.xlu0 %v6, 68
    %v8 = vpop.permute.xlu0 %7
    %vm9 = vcmask 589344
    %10 = vst.msk [vmem:[#allocation0] sm:$0x1] %vm9, %v8
    %s11 = scalar_lea.vmem %s0, 16
    %v12 = vld [vmem:[%s11] sm:$0x1]
    %13 = vrot.lane.b32.xlu0 %v12, 64
    %v14 = vpop.permute.xlu0 %13
    %vm15 = vcmask 556544
    %16 = vst.msk [vmem:[#allocation0] sm:$0x1] %vm15, %v14
    %s17 = scalar_lea.vmem %s0, 15
    %v18 = vld [vmem:[%s17] sm:$0x1]
    %19 = vrot.lane.b32.xlu0 %v18, 60
    %v20 = vpop.permute.xlu0 %19
    %vm21 = vcmask 523744
    %22 = vst.msk [vmem:[#allocation0] sm:$0x1] %vm21, %v20
    %s23 = scalar_lea.vmem %s0, 14
    %v24 = vld [vmem:[%s23] sm:$0x1]
    %25 = vrot.lane.b32.xlu0 %v24, 56
    %v26 = vpop.permute.xlu0 %25
    %vm27 = vcmask 490944
    %28 = vst.msk [vmem:[#allocation0] sm:$0x1] %vm27, %v26
    %s29 = scalar_lea.vmem %s0, 13
    %v30 = vld [vmem:[%s29] sm:$0x1]
    %31 = vrot.lane.b32.xlu0 %v30, 52
    %v32 = vpop.permute.xlu0 %31
    %vm33 = vcmask 458144
    %34 = vst.msk [vmem:[#allocation0] sm:$0x1] %vm33, %v32
    %s35 = scalar_lea.vmem %s0, 12
    %v36 = vld [vmem:[%s35] sm:$0x1]
    %37 = vrot.lane.b32.xlu0 %v36, 48
    %v38 = vpop.permute.xlu0 %37
    %vm39 = vcmask 425344
    %40 = vst.msk [vmem:[#allocation0] sm:$0x1] %vm39, %v38
    %s41 = scalar_lea.vmem %s0, 11
    %v42 = vld [vmem:[%s41] sm:$0x1]
    %43 = vrot.lane.b32.xlu0 %v42, 44
    %v44 = vpop.permute.xlu0 %43
    %vm45 = vcmask 392544
    %46 = vst.msk [vmem:[#allocation0] sm:$0x1] %vm45, %v44
    %s47 = scalar_lea.vmem %s0, 10
    %v48 = vld [vmem:[%s47] sm:$0x1]
    %49 = vrot.lane.b32.xlu0 %v48, 40
    %v50 = vpop.permute.xlu0 %49
    %vm51 = vcmask 359744
    %52 = vst.msk [vmem:[#allocation0] sm:$0x1] %vm51, %v50
    %s53 = scalar_lea.vmem %s0, 9
    %v54 = vld [vmem:[%s53] sm:$0x1]
    %55 = vrot.lane.b32.xlu0 %v54, 36
    %v56 = vpop.permute.xlu0 %55
    %vm57 = vcmask 326944
    %58 = vst.msk [vmem:[#allocation0] sm:$0x1] %vm57, %v56
    %s59 = scalar_lea.vmem %s0, 8
    %v60 = vld [vmem:[%s59] sm:$0x1]
    %61 = vrot.lane.b32.xlu0 %v60, 32
    %v62 = vpop.permute.xlu0 %61
    %vm63 = vcmask 294144
    %64 = vst.msk [vmem:[#allocation0] sm:$0x1] %vm63, %v62
    %s65 = scalar_lea.vmem %s0, 7
    %v66 = vld [vmem:[%s65] sm:$0x1]
    %67 = vrot.lane.b32.xlu0 %v66, 28
    %v68 = vpop.permute.xlu0 %67
    %vm69 = vcmask 261344
    %70 = vst.msk [vmem:[#allocation0] sm:$0x1] %vm69, %v68
    %s71 = scalar_lea.vmem %s0, 6
    %v72 = vld [vmem:[%s71] sm:$0x1]
    %73 = vrot.lane.b32.xlu0 %v72, 24
    %v74 = vpop.permute.xlu0 %73
    %vm75 = vcmask 228544
    %76 = vst.msk [vmem:[#allocation0] sm:$0x1] %vm75, %v74
    %s77 = scalar_lea.vmem %s0, 5
    %v78 = vld [vmem:[%s77] sm:$0x1]
    %79 = vrot.lane.b32.xlu0 %v78, 20
    %v80 = vpop.permute.xlu0 %79
    %vm81 = vcmask 195744
    %82 = vst.msk [vmem:[#allocation0] sm:$0x1] %vm81, %v80
    %s83 = scalar_lea.vmem %s0, 4
    %v84 = vld [vmem:[%s83] sm:$0x1]
    %85 = vrot.lane.b32.xlu0 %v84, 16
    %v86 = vpop.permute.xlu0 %85
    %vm87 = vcmask 162944
    %88 = vst.msk [vmem:[#allocation0] sm:$0x1] %vm87, %v86
    %s89 = scalar_lea.vmem %s0, 3
    %v90 = vld [vmem:[%s89] sm:$0x1]
    %91 = vrot.lane.b32.xlu0 %v90, 12
    %v92 = vpop.permute.xlu0 %91
    %vm93 = vcmask 130144
    %94 = vst.msk [vmem:[#allocation0] sm:$0x1] %vm93, %v92
    %s95 = scalar_lea.vmem %s0, 2
    %v96 = vld [vmem:[%s95] sm:$0x1]
    %97 = vrot.lane.b32.xlu0 %v96, 8
    %v98 = vpop.permute.xlu0 %97
    %vm99 = vcmask 97344
    %100 = vst.msk [vmem:[#allocation0] sm:$0x1] %vm99, %v98
    %s101 = scalar_lea.vmem %s0, 1
    %v102 = vld [vmem:[%s101] sm:$0x1]
    %103 = vrot.lane.b32.xlu0 %v102, 4
    %v104 = vpop.permute.xlu0 %103
    %vm105 = vcmask 64544
    %106 = vst.msk [vmem:[#allocation0] sm:$0x1] %vm105, %v104
    %s108 = ssub.s32 2, 1
    %v109 = vld [vmem:[#allocation0] sm:%s108]
    %s111 = ssub.s32 2, 1
    %112 = vst [vmem:[%s1] sm:%s111] %v109

// kernel: selective_conv2d.1
$region0: #{selective_conv2d.1}
  #allocation0 [shape = 'u32[]', space=smem, size = 0x4, offset = 0x4, fixed_abs, tag = 'smem constant byte address 0x4 - core index']
  #allocation1 [shape = 'u32[72,128]{1,0:T(1,128)}', space=vmem, size = 0x9000, scoped, tag = 'internal scratch']
  %s0 = inlined_call_operand.vmem [shape: bf16[2,18,72], index: 0, kind: input, shape index: {}]
  %s1 = inlined_call_operand.vmem [shape: f32[1,72], index: 1, kind: input, shape index: {}]
  %s2 = inlined_call_operand.vmem [shape: f32[1,72], index: 2, kind: input, shape index: {}]
  %s3 = inlined_call_operand.vmem [shape: bf16[3,72,128], index: 3, kind: input, shape index: {}]
  %s4 = inlined_call_operand.vmem [shape: f32[2,16,128], index: 4, kind: output, shape index: {}]
  %s5 = sld [smem:[#allocation0]]
  $region49: #{selective_conv2d.1} parent=0
    _
  %s7 = ssub.s32 1, %s5
  %s8 = scalar_select 0, %s7, %s5
  loop: start=0, step=1, limit=4
  $region2: #{selective_conv2d.1} parent=0 // loop_pre_header
    _
  $region3: #{selective_conv2d.1} parent=0 // loop_header
    %s10 = sphi 0, %s14
    %p11 = scmp.ge.s32.totalorder %s10, 4
    %s20 = sphi 0, %s22
    %s23 = sphi 0, %s20
    %s24 = sphi 0, %s23
    %s40 = sphi 0, %s24
    %s44 = sphi 0, %s44
    %s46 = sphi 0, %s44
    %s47 = sphi 0, %s46
    %s61 = sphi 0, %s47
    %s65 = sphi 0, %s65
    %s67 = sphi 0, %s65
    %s68 = sphi 0, %s67
    %s82 = sphi 0, %s68
    %s86 = sphi 0, %s86
    %s88 = sphi 0, %s86
    %s89 = sphi 0, %s88
    %s103 = sphi 0, %s89
    %s109 = sphi 0, %s111
    %s112 = sphi 0, %s109
    %s113 = sphi 0, %s112
    %s129 = sphi 0, %s113
  $region4: #{selective_conv2d.1} parent=0 // loop_header_branch
    %13 = sbr.rel (%p11) target = $region8
  $region5: #{selective_conv2d.1} parent=0 // loop_body
    %s15 = ssub.s32 %s10, 1
    %s16 = ssub.s32 %s10, 2
    %s17 = sadd.s32 %s10, 1
    %s18 = ssub.s32 %s10, %s17
    %p19 = scmp.eq.s32.totalorder %s18, 0
    %s21 = sadd.s32 %s20, 1
    %s22 = scalar_select %p19, %s20, %s21
    %p25 = pneg %p19
    %p26 = scmp.eq.s32.totalorder %s10, 1
    %p27 = por %p25, %p26
    %p28 = scmp.ne.s32.totalorder %s20, %s23
    %p29 = scmp.eq.s32.totalorder %s10, 0
    %p30 = por %p28, %p29
    %p31 = scmp.ne.s32.totalorder %s20, %s23
    %p32 = scmp.eq.s32.totalorder %s15, 1
    %p33 = por %p31, %p32
    %p34 = scmp.ne.s32.totalorder %s23, %s24
    %p35 = scmp.eq.s32.totalorder %s15, 0
    %p36 = por %p34, %p35
    %p37 = scmp.ne.s32.totalorder %s23, %s24
    %p38 = scmp.eq.s32.totalorder %s16, 1
    %p39 = por %p37, %p38
    %p41 = scmp.ne.s32.totalorder %s24, %s40
    %p42 = scmp.eq.s32.totalorder %s16, 0
    %p43 = por %p41, %p42
    %s45 = sadd.s32 %s44, 1
    %p48 = scmp.eq.s32.totalorder %s10, 1
    %p49 = scmp.ne.s32.totalorder %s44, %s46
    %p50 = scmp.eq.s32.totalorder %s10, 0
    %p51 = por %p49, %p50
    %p52 = scmp.ne.s32.totalorder %s44, %s46
    %p53 = scmp.eq.s32.totalorder %s15, 1
    %p54 = por %p52, %p53
    %p55 = scmp.ne.s32.totalorder %s46, %s47
    %p56 = scmp.eq.s32.totalorder %s15, 0
    %p57 = por %p55, %p56
    %p58 = scmp.ne.s32.totalorder %s46, %s47
    %p59 = scmp.eq.s32.totalorder %s16, 1
    %p60 = por %p58, %p59
    %p62 = scmp.ne.s32.totalorder %s47, %s61
    %p63 = scmp.eq.s32.totalorder %s16, 0
    %p64 = por %p62, %p63
    %s66 = sadd.s32 %s65, 1
    %p69 = scmp.eq.s32.totalorder %s10, 1
    %p70 = scmp.ne.s32.totalorder %s65, %s67
    %p71 = scmp.eq.s32.totalorder %s10, 0
    %p72 = por %p70, %p71
    %p73 = scmp.ne.s32.totalorder %s65, %s67
    %p74 = scmp.eq.s32.totalorder %s15, 1
    %p75 = por %p73, %p74
    %p76 = scmp.ne.s32.totalorder %s67, %s68
    %p77 = scmp.eq.s32.totalorder %s15, 0
    %p78 = por %p76, %p77
    %p79 = scmp.ne.s32.totalorder %s67, %s68
    %p80 = scmp.eq.s32.totalorder %s16, 1
    %p81 = por %p79, %p80
    %p83 = scmp.ne.s32.totalorder %s68, %s82
    %p84 = scmp.eq.s32.totalorder %s16, 0
    %p85 = por %p83, %p84
    %s87 = sadd.s32 %s86, 1
    %p90 = scmp.eq.s32.totalorder %s10, 1
    %p91 = scmp.ne.s32.totalorder %s86, %s88
    %p92 = scmp.eq.s32.totalorder %s10, 0
    %p93 = por %p91, %p92
    %p94 = scmp.ne.s32.totalorder %s86, %s88
    %p95 = scmp.eq.s32.totalorder %s15, 1
    %p96 = por %p94, %p95
    %p97 = scmp.ne.s32.totalorder %s88, %s89
    %p98 = scmp.eq.s32.totalorder %s15, 0
    %p99 = por %p97, %p98
    %p100 = scmp.ne.s32.totalorder %s88, %s89
    %p101 = scmp.eq.s32.totalorder %s16, 1
    %p102 = por %p100, %p101
    %p104 = scmp.ne.s32.totalorder %s89, %s103
    %p105 = scmp.eq.s32.totalorder %s16, 0
    %p106 = por %p104, %p105
    %s107 = ssub.s32 %s10, %s17
    %p108 = scmp.eq.s32.totalorder %s107, 0
    %s110 = sadd.s32 %s109, 1
    %s111 = scalar_select %p108, %s109, %s110
    %p114 = pneg %p108
    %p115 = scmp.eq.s32.totalorder %s10, 1
    %p116 = por %p114, %p115
    %p117 = scmp.ne.s32.totalorder %s109, %s112
    %p118 = scmp.eq.s32.totalorder %s10, 0
    %p119 = por %p117, %p118
    %p120 = scmp.ne.s32.totalorder %s109, %s112
    %p121 = scmp.eq.s32.totalorder %s15, 1
    %p122 = por %p120, %p121
    %p123 = scmp.ne.s32.totalorder %s112, %s113
    %p124 = scmp.eq.s32.totalorder %s15, 0
    %p125 = por %p123, %p124
    %p126 = scmp.ne.s32.totalorder %s112, %s113
    %p127 = scmp.eq.s32.totalorder %s16, 1
    %p128 = por %p126, %p127
    %p130 = scmp.ne.s32.totalorder %s113, %s129
    %p131 = scmp.eq.s32.totalorder %s16, 0
    %p132 = por %p130, %p131
    %p133 = scmp.le.s32.totalorder 1, %s10
    %p134 = scmp.lt.s32.totalorder %s10, 3
    %p135 = pnand %p133, %p134
    %p136 = pneg %p135
    // Predicated region
    $region9: #{selective_conv2d.1} parent=5 // pred_check
      _
    $region10: #{selective_conv2d.1} parent=5 // pred_check_branch
      %138 = sbr.rel (%p135) target = $region12
    $region11: #{selective_conv2d.1} parent=5 // pred_region
      %s139 = ssub.s32 %s10, 1
      // Predicated region
      $region13: #{selective_conv2d.1} parent=11 // pred_check
        %p140 = pneg %p57
      $region14: #{selective_conv2d.1} parent=11 // pred_check_branch
        %142 = sbr.rel (%p140) target = $region16
      $region15: #{selective_conv2d.1} parent=11 // pred_region
        _
      $region16: #{selective_conv2d.1} parent=11 // pred_fallthru
        _
      // Predicated region
      $region17: #{selective_conv2d.1} parent=11 // pred_check
        %p143 = pneg %p78
      $region18: #{selective_conv2d.1} parent=11 // pred_check_branch
        %145 = sbr.rel (%p143) target = $region20
      $region19: #{selective_conv2d.1} parent=11 // pred_region
        _
      $region20: #{selective_conv2d.1} parent=11 // pred_fallthru
        _
      // Predicated region
      $region21: #{selective_conv2d.1} parent=11 // pred_check
        %p146 = pneg %p99
      $region22: #{selective_conv2d.1} parent=11 // pred_check_branch
        %148 = sbr.rel (%p146) target = $region24
      $region23: #{selective_conv2d.1} parent=11 // pred_region
        _
      $region24: #{selective_conv2d.1} parent=11 // pred_fallthru
        _
    $region12: #{selective_conv2d.1} parent=5 // pred_fallthru
      _
    %p149 = scmp.lt.s32.totalorder %s10, 2
    // Predicated region
    $region25: #{selective_conv2d.1} parent=5 // pred_check
      %p150 = pneg %p149
    $region26: #{selective_conv2d.1} parent=5 // pred_check_branch
      %152 = sbr.rel (%p150) target = $region28
    $region27: #{selective_conv2d.1} parent=5 // pred_region
      // Predicated region
      $region29: #{selective_conv2d.1} parent=27 // pred_check
        %p153 = pneg %p30
      $region30: #{selective_conv2d.1} parent=27 // pred_check_branch
        %155 = sbr.rel (%p153) target = $region32
      $region31: #{selective_conv2d.1} parent=27 // pred_region
        %p156 = scmp.lt.s32.totalorder %s10, 1
        %s157 = scalar_select %p156, %s10, 1
        %s158 = smul.addr %s157, 3
        %s159 = smul.addr %s158, 4
        %s160 = scalar_lea.vmem %s0, %s159
      $region32: #{selective_conv2d.1} parent=27 // pred_fallthru
        _
    $region28: #{selective_conv2d.1} parent=5 // pred_fallthru
      _
    %p161 = scmp.le.s32.totalorder 1, %s10
    %p162 = scmp.lt.s32.totalorder %s10, 3
    %p163 = pnand %p161, %p162
    %p164 = pneg %p163
    // Predicated region
    $region33: #{selective_conv2d.1} parent=5 // pred_check
      _
    $region34: #{selective_conv2d.1} parent=5 // pred_check_branch
      %166 = sbr.rel (%p163) target = $region36
    $region35: #{selective_conv2d.1} parent=5 // pred_region
      %s167 = ssub.s32 %s10, 1
      %p168 = scmp.lt.s32.totalorder %s15, 1
      %s169 = scalar_select %p168, %s15, 1
      %s170 = smul.addr %s169, 3
      %s171 = smul.addr %s170, 4
      %s172 = scalar_lea.vmem %s0, %s171
      %p173 = pneg %p36
      %p174 = pneg %p33
      %p175 = pneg %p57
      %p176 = pneg %p54
      %p177 = pneg %p78
      %p178 = pneg %p75
      %p179 = pneg %p99
      %p180 = pneg %p96
      %p181 = pneg %p125
      %p182 = pneg %p122
      %p183 = scmp.lt.s32.totalorder %s15, 1
      %s184 = scalar_select %p183, %s15, 1
      %s185 = smul.addr %s184, 2
      %s186 = smul.addr %s185, 8
      %s187 = scalar_lea.vmem %s4, %s186
      %p188 = scmp.lt.s32.totalorder %s15, 1
      %s189 = scalar_select %p188, %s15, 1
      %s190 = smul.addr %s189, 3
      %s191 = smul.addr %s190, 4
      %s192 = scalar_lea.vmem %s0, %s191
      %p193 = scmp.lt.s32.totalorder %s15, 1
      %s194 = scalar_select %p193, %s15, 1
      %s195 = smul.addr %s194, 2
      %s196 = smul.addr %s195, 8
      %s197 = scalar_lea.vmem %s4, %s196
      %v199 = vld [vmem:[%s1] sm:$0x1]
      %v200 = vld [vmem:[%s2] sm:$0x1]
      %v201 = vld [vmem:[%s192] sm:$0xf]
      %v202 = vld [vmem:[%s192 + $0x4] sm:$0xf]
      %v203 = vunpack.c.l.bf16 %v201
      %v204 = vunpack.c.l.bf16 %v202
      %v205 = vlaneseq
      %v206 = vshrl.u32 %v205, 7
      %v207 = vadd.s32 %v206, 8
      %vm208 = vcmp.ge.s32.totalorder %v206, 1
      %vm209 = vcmp.ge.s32.totalorder %v207, 1
      %vm210 = vcmp.lt.s32.totalorder %v206, 17
      %vm211 = vcmp.lt.s32.totalorder %v207, 17
      %vm212 = vmand %vm208, %vm210
      %vm213 = vmand %vm209, %vm211
      %v214 = vsel %vm212, 1, 0
      %v215 = vsel %vm213, 1, 0
      %v216 = vcvt.s32.f32 %v214
      %v217 = vcvt.s32.f32 %v215
      %v219 = vperm.slane %v199, 0
      %v221 = vmul.f32 %v203, %v219
      %v222 = vmul.f32 %v204, %v219
      %v224 = vperm.slane %v200, 0
      %v226 = vmul.f32 %v216, %v224
      %v227 = vmul.f32 %v217, %v224
      %v228 = vadd.f32 %v221, %v226
      %v229 = vadd.f32 %v222, %v227
      %v230 = vpack.c.bf16 %v229, %v228
      %v231 = vld [vmem:[%s3] sm:$0xf]
      %v232 = vld [vmem:[%s3 + $0x4] sm:$0xf]
      %v233 = vld [vmem:[%s3 + $0x8] sm:$0xf]
      %v234 = vld [vmem:[%s3 + $0xc] sm:$0xf]
      %v235 = vld [vmem:[%s3 + $0x10] sm:$0xf]
      %v236 = vld [vmem:[%s3 + $0x14] sm:$0xf]
      %v237 = vld [vmem:[%s3 + $0x18] sm:$0xf]
      %v238 = vld [vmem:[%s3 + $0x1c] sm:$0xf]
      %v239 = vld [vmem:[%s3 + $0x20] sm:$0xf]
      %v249 = vunpack.c.l.b16 %v231
      %v250 = vunpack.c.l.b16 %v232
      %v251 = vunpack.c.l.b16 %v233
      %v252 = vunpack.c.l.b16 %v234
      %v253 = vunpack.c.l.b16 %v235
      %v254 = vunpack.c.l.b16 %v236
      %v255 = vunpack.c.l.b16 %v237
      %v256 = vunpack.c.l.b16 %v238
      %v257 = vunpack.c.l.b16 %v239
      %v258 = vpack.c.b16 %v250, %v249
      %v259 = vpack.c.b16 %v252, %v251
      %v260 = vpack.c.b16 %v254, %v253
      %v261 = vpack.c.b16 %v256, %v255
      %v262 = vpack.c.b16 %v257, %v257
      %vm267 = vcmask 588800
      %v269 = vsel %vm267, %v230, 0
      %vm271 = vcmask 1043456
      %v273 = vsel %vm271, %v262, 0
      %275 = vmatpush.bf16.msra.mxu0 0
      %276 = vmatpush.bf16.msra.mxu0 0
      %277 = vmatpush.bf16.msra.mxu0 0
      %278 = vmatpush.bf16.msra.mxu0 %v273
      %279 = vmatpush.bf16.msra.mxu0 %v261
      %280 = vmatpush.bf16.msra.mxu0 %v260
      %281 = vmatpush.bf16.msra.mxu0 %v259
      %282 = vmatpush.bf16.msra.mxu0 %v258
      %283 = vmatmul.bf16.gmra.mxu0 %v269
      %v284 = vpop.f32.mrf.mxu0
      %v285 = vadd.f32 0.0, %v284
      %v286 = vpop.f32.mrf.mxu0
      %v287 = vadd.f32 0.0, %v286
      %288 = vdwg.mxu0
      %289 = vst [vmem:[%s197] sm:$0xff] %v285
      %290 = vst [vmem:[%s197 + $0x8] sm:$0xff] %v287
      %v291 = vld [vmem:[%s192] sm:$0xf]
      %v292 = vld [vmem:[%s192 + $0x4] sm:$0xf]
      %v293 = vld [vmem:[%s192 + $0x8] sm:$0x1]
      %v294 = vunpack.c.l.bf16 %v291
      %v295 = vunpack.c.l.bf16 %v292
      %v296 = vunpack.c.l.bf16 %v293
      %v297 = vadd.s32 %v206, 1
      %v298 = vadd.s32 %v207, 1
      %vm299 = vcmp.ge.s32.totalorder %v297, 1
      %vm300 = vcmp.ge.s32.totalorder %v298, 1
      %vm301 = vcmp.lt.s32.totalorder %v297, 17
      %vm302 = vcmp.lt.s32.totalorder %v298, 17
      %vm303 = vmand %vm299, %vm301
      %vm304 = vmand %vm300, %vm302
      %v305 = vsel %vm303, 1, 0
      %v306 = vsel %vm304, 1, 0
      %v307 = vcvt.s32.f32 %v305
      %v308 = vcvt.s32.f32 %v306
      %v309 = vmul.f32 %v294, %v219
      %v310 = vmul.f32 %v295, %v219
      %v311 = vmul.f32 %v296, %v219
      %v312 = vmul.f32 %v307, %v224
      %v313 = vmul.f32 %v308, %v224
      %vm316 = vcmask 1040384
      %v317 = vrot.slane %v312, 7
      %v318 = vrot.slane %v313, 7
      %v319 = vsel %vm316, %v317, %v318
      %v323 = vadd.f32 %v309, %v317
      %v324 = vadd.f32 %v310, %v319
      %v325 = vadd.f32 %v311, %v318
      %v326 = vpack.c.bf16 %v324, %v323
      %v327 = vpack.c.bf16 %v325, %v325
      %s328 = scalar_lea.vmem %s3, 36
      %v329 = vld [vmem:[%s328] sm:$0xf]
      %v330 = vld [vmem:[%s328 + $0x4] sm:$0xf]
      %v331 = vld [vmem:[%s328 + $0x8] sm:$0xf]
      %v332 = vld [vmem:[%s328 + $0xc] sm:$0xf]
      %v333 = vld [vmem:[%s328 + $0x10] sm:$0xf]
      %v334 = vld [vmem:[%s328 + $0x14] sm:$0xf]
      %v335 = vld [vmem:[%s328 + $0x18] sm:$0xf]
      %v336 = vld [vmem:[%s328 + $0x1c] sm:$0xf]
      %v337 = vld [vmem:[%s328 + $0x20] sm:$0xf]
      %vm338 = vsmask.f32 7424
      %v340 = vshrl.u32 %v326, 16
      %v342 = vshll.u32 %v326, 16
      %v344 = vrot.slane %v342, 1
      %v345 = vor.u32 %v340, %v344
      %v347 = vshll.u32 %v327, 16
      %v349 = vrot.slane %v347, 1
      %v350 = vsel %vm338, %v345, %v349
      %v360 = vunpack.c.l.b16 %v329
      %v361 = vunpack.c.l.b16 %v330
      %v362 = vunpack.c.l.b16 %v331
      %v363 = vunpack.c.l.b16 %v332
      %v364 = vunpack.c.l.b16 %v333
      %v365 = vunpack.c.l.b16 %v334
      %v366 = vunpack.c.l.b16 %v335
      %v367 = vunpack.c.l.b16 %v336
      %v368 = vunpack.c.l.b16 %v337
      %v369 = vpack.c.b16 %v361, %v360
      %v370 = vpack.c.b16 %v363, %v362
      %v371 = vpack.c.b16 %v365, %v364
      %v372 = vpack.c.b16 %v367, %v366
      %v373 = vpack.c.b16 %v368, %v368
      %v379 = vsel %vm267, %v350, 0
      %v382 = vsel %vm271, %v373, 0
      %384 = vmatpush.bf16.msra.mxu0 0
      %385 = vmatpush.bf16.msra.mxu0 0
      %386 = vmatpush.bf16.msra.mxu0 0
      %387 = vmatpush.bf16.msra.mxu0 %v382
      %388 = vmatpush.bf16.msra.mxu0 %v372
      %389 = vmatpush.bf16.msra.mxu0 %v371
      %390 = vmatpush.bf16.msra.mxu0 %v370
      %391 = vmatpush.bf16.msra.mxu0 %v369
      %392 = vmatmul.bf16.gmra.mxu0 %v379
      %v393 = vpop.f32.mrf.mxu0
      %v394 = vadd.f32 0.0, %v393
      %v395 = vpop.f32.mrf.mxu0
      %v396 = vadd.f32 0.0, %v395
      %397 = vdwg.mxu0
      %v398 = vld [vmem:[%s197] sm:$0xff]
      %v399 = vld [vmem:[%s197 + $0x8] sm:$0xff]
      %v400 = vadd.f32 %v398, %v394
      %v401 = vadd.f32 %v399, %v396
      %402 = vst [vmem:[%s197] sm:$0xff] %v400
      %403 = vst [vmem:[%s197 + $0x8] sm:$0xff] %v401
      %v404 = vld [vmem:[%s192] sm:$0xe]
      %v405 = vld [vmem:[%s192 + $0x4] sm:$0xf]
      %v406 = vld [vmem:[%s192 + $0x8] sm:$0x1]
      %v407 = vunpack.c.l.bf16 %v404
      %v408 = vunpack.c.l.bf16 %v405
      %v409 = vunpack.c.l.bf16 %v406
      %v410 = vadd.s32 %v206, 2
      %v411 = vadd.s32 %v207, 2
      %vm412 = vcmp.ge.s32.totalorder %v410, 1
      %vm413 = vcmp.ge.s32.totalorder %v411, 1
      %vm414 = vcmp.lt.s32.totalorder %v410, 17
      %vm415 = vcmp.lt.s32.totalorder %v411, 17
      %vm416 = vmand %vm412, %vm414
      %vm417 = vmand %vm413, %vm415
      %v418 = vsel %vm416, 1, 0
      %v419 = vsel %vm417, 1, 0
      %v420 = vcvt.s32.f32 %v418
      %v421 = vcvt.s32.f32 %v419
      %v422 = vmul.f32 %v407, %v219
      %v423 = vmul.f32 %v408, %v219
      %v424 = vmul.f32 %v409, %v219
      %v425 = vmul.f32 %v420, %v224
      %v426 = vmul.f32 %v421, %v224
      %vm429 = vcmask 1041408
      %v430 = vrot.slane %v425, 6
      %v431 = vrot.slane %v426, 6
      %v432 = vsel %vm429, %v430, %v431
      %v436 = vadd.f32 %v422, %v430
      %v437 = vadd.f32 %v423, %v432
      %v438 = vadd.f32 %v424, %v431
      %v439 = vpack.c.bf16 %v437, %v436
      %v440 = vpack.c.bf16 %v438, %v438
      %s441 = scalar_lea.vmem %s3, 72
      %v442 = vld [vmem:[%s441] sm:$0xf]
      %v443 = vld [vmem:[%s441 + $0x4] sm:$0xf]
      %v444 = vld [vmem:[%s441 + $0x8] sm:$0xf]
      %v445 = vld [vmem:[%s441 + $0xc] sm:$0xf]
      %v446 = vld [vmem:[%s441 + $0x10] sm:$0xf]
      %v447 = vld [vmem:[%s441 + $0x14] sm:$0xf]
      %v448 = vld [vmem:[%s441 + $0x18] sm:$0xf]
      %v449 = vld [vmem:[%s441 + $0x1c] sm:$0xf]
      %v450 = vld [vmem:[%s441 + $0x20] sm:$0xf]
      %vm453 = vcmask 1046528
      %v454 = vrot.slane %v439, 1
      %v455 = vrot.slane %v440, 1
      %v456 = vsel %vm453, %v454, %v455
      %v466 = vunpack.c.l.b16 %v442
      %v467 = vunpack.c.l.b16 %v443
      %v468 = vunpack.c.l.b16 %v444
      %v469 = vunpack.c.l.b16 %v445
      %v470 = vunpack.c.l.b16 %v446
      %v471 = vunpack.c.l.b16 %v447
      %v472 = vunpack.c.l.b16 %v448
      %v473 = vunpack.c.l.b16 %v449
      %v474 = vunpack.c.l.b16 %v450
      %v475 = vpack.c.b16 %v467, %v466
      %v476 = vpack.c.b16 %v469, %v468
      %v477 = vpack.c.b16 %v471, %v470
      %v478 = vpack.c.b16 %v473, %v472
      %v479 = vpack.c.b16 %v474, %v474
      %v485 = vsel %vm267, %v456, 0
      %v488 = vsel %vm271, %v479, 0
      %490 = vmatpush.bf16.msra.mxu0 0
      %491 = vmatpush.bf16.msra.mxu0 0
      %492 = vmatpush.bf16.msra.mxu0 0
      %493 = vmatpush.bf16.msra.mxu0 %v488
      %494 = vmatpush.bf16.msra.mxu0 %v478
      %495 = vmatpush.bf16.msra.mxu0 %v477
      %496 = vmatpush.bf16.msra.mxu0 %v476
      %497 = vmatpush.bf16.msra.mxu0 %v475
      %498 = vmatmul.bf16.gmra.mxu0 %v485
      %v499 = vpop.f32.mrf.mxu0
      %v500 = vadd.f32 0.0, %v499
      %v501 = vpop.f32.mrf.mxu0
      %v502 = vadd.f32 0.0, %v501
      %503 = vdwg.mxu0
      %v504 = vld [vmem:[%s197] sm:$0xff]
      %v505 = vld [vmem:[%s197 + $0x8] sm:$0xff]
      %v506 = vadd.f32 %v504, %v500
      %v507 = vadd.f32 %v505, %v502
      %508 = vst [vmem:[%s197] sm:$0xff] %v506
      %509 = vst [vmem:[%s197 + $0x8] sm:$0xff] %v507
      %p510 = scmp.lt.s32.totalorder %s15, 1
      %s511 = scalar_select %p510, %s15, 1
      %s512 = smul.addr %s511, 2
      %s513 = smul.addr %s512, 8
      %s514 = scalar_lea.vmem %s4, %s513
      // Predicated region
      $region37: #{selective_conv2d.1} parent=35 // pred_check
        %p515 = pneg %p122
      $region38: #{selective_conv2d.1} parent=35 // pred_check_branch
        %517 = sbr.rel (%p515) target = $region40
      $region39: #{selective_conv2d.1} parent=35 // pred_region
        _
      $region40: #{selective_conv2d.1} parent=35 // pred_fallthru
        _
    $region36: #{selective_conv2d.1} parent=5 // pred_fallthru
      _
    %p518 = scmp.le.s32.totalorder 2, %s10
    // Predicated region
    $region41: #{selective_conv2d.1} parent=5 // pred_check
      %p519 = pneg %p518
    $region42: #{selective_conv2d.1} parent=5 // pred_check_branch
      %521 = sbr.rel (%p519) target = $region44
    $region43: #{selective_conv2d.1} parent=5 // pred_region
      %s522 = ssub.s32 %s10, 2
      // Predicated region
      $region45: #{selective_conv2d.1} parent=43 // pred_check
        %p523 = pneg %p128
      $region46: #{selective_conv2d.1} parent=43 // pred_check_branch
        %525 = sbr.rel (%p523) target = $region48
      $region47: #{selective_conv2d.1} parent=43 // pred_region
        %p526 = scmp.lt.s32.totalorder %s16, 1
        %s527 = scalar_select %p526, %s16, 1
        %s528 = smul.addr %s527, 2
        %s529 = smul.addr %s528, 8
        %s530 = scalar_lea.vmem %s4, %s529
      $region48: #{selective_conv2d.1} parent=43 // pred_fallthru
        _
    $region44: #{selective_conv2d.1} parent=5 // pred_fallthru
      _
  $region6: #{selective_conv2d.1} parent=0 // loop_footer
    %s14 = sadd.s32 1, %s10
  $region7: #{selective_conv2d.1} parent=0 // loop_footer_branch
    %9 = sbr.rel target = $region3
  $region8: #{selective_conv2d.1} parent=0 // loop_exit
    _

</llo_original>
